<compile_context>
chip_gen: v7x
topology: tpu7x:2x2x1
jax: 0.10.0
libtpu: 0.0.40
codegen_flags: <defaults>
</compile_context>

<pallas_src>
import functools

import jax
import jax.numpy as jnp
from jax.experimental import pallas as pl
from jax.experimental.pallas import tpu as pltpu


def _fused_mlp_kernel(n_layers, *refs):
    """refs = (x_ref, w0_ref, b0_ref, w1_ref, b1_ref, ..., o_ref).

    Chains relu(x @ W_i + b_i) for all layers in one kernel body; the
    activation never leaves the core between layers.
    """
    x_ref = refs[0]
    o_ref = refs[-1]
    wb_refs = refs[1:-1]

    x = x_ref[...]
    for i in range(n_layers):
        w = wb_refs[2 * i][...]          # (K_i, N_i)
        b = wb_refs[2 * i + 1][...]      # (1, N_i) broadcast over batch
        y = jnp.dot(x, w, preferred_element_type=jnp.float32) + b
        x = jnp.maximum(y, 0.0)
    o_ref[...] = x.astype(o_ref.dtype)


def _round_up(x, m):
    return ((x + m - 1) // m) * m


def mlp_encoder_forward(obs, params):
    """Fused forward pass of MLPEncoder: ReLU after every layer (incl. last)."""
    n_layers = len(params)
    B, _ = obs.shape
    feature_dim = params[-1][0].shape[1]

    # Pad batch to a multiple of 8 sublanes (free work; sliced off afterwards).
    Bp = _round_up(max(B, 1), 8)
    if Bp != B:
        obs = jnp.pad(obs, ((0, Bp - B), (0, 0)))

    # Pad the final output dim to a multiple of 128 lanes -> lane-dense stores.
    # Extra weight/bias columns are zero, so relu(0) = 0 in the padded lanes.
    Np = _round_up(feature_dim, 128)
    w_last, b_last = params[-1]
    if Np != feature_dim:
        w_last = jnp.pad(w_last, ((0, 0), (0, Np - feature_dim)))
        b_last = jnp.pad(b_last, ((0, 0), (0, Np - feature_dim)))
    layers = list(params[:-1]) + [(w_last, b_last)]

    flat_wb = []
    for w, b in layers:
        flat_wb.extend((w, b))

    # Advisory cost estimate for XLA's scheduler.
    flops = 0
    bytes_accessed = obs.size * obs.dtype.itemsize
    for w, b in layers:
        k, n = w.shape
        flops += 2 * Bp * k * n
        bytes_accessed += (w.size + b.size) * w.dtype.itemsize
    bytes_accessed += Bp * Np * obs.dtype.itemsize

    out = pl.pallas_call(
        functools.partial(_fused_mlp_kernel, n_layers),
        out_shape=jax.ShapeDtypeStruct((Bp, Np), obs.dtype),
        in_specs=[pl.BlockSpec(memory_space=pltpu.MemorySpace.VMEM)]
        * (1 + len(flat_wb)),
        out_specs=pl.BlockSpec(memory_space=pltpu.MemorySpace.VMEM),
        cost_estimate=pl.CostEstimate(
            flops=flops, transcendentals=0, bytes_accessed=bytes_accessed),
    )(obs, *flat_wb)

    return out[:B, :feature_dim]


def init_mlp_encoder_params(key, obs_shape, feature_dim, num_layers):
    """Deterministic init matching the torch module's layer shapes.

    Layers: Linear(obs_shape, 512), (num_layers-1) x Linear(512, 512),
            Linear(512, feature_dim). Uniform(-1/sqrt(fan_in), 1/sqrt(fan_in)),
            mirroring torch.nn.Linear's default init. Weights stored
            (in_features, out_features); bias stored (1, out_features).
    """
    dims = [obs_shape] + [512] * num_layers + [feature_dim]
    params = []
    for i in range(len(dims) - 1):
        fan_in, fan_out = dims[i], dims[i + 1]
        key, kw, kb = jax.random.split(key, 3)
        bound = 1.0 / jnp.sqrt(jnp.float32(fan_in))
        w = jax.random.uniform(kw, (fan_in, fan_out), jnp.float32, -bound, bound)
        b = jax.random.uniform(kb, (1, fan_out), jnp.float32, -bound, bound)
        params.append((w, b))
    return params


def mlp_encoder_reference(obs, params):
    x = obs
    for w, b in params:
        x = jnp.maximum(x @ w + b, 0.0)
    return x


if __name__ == "__main__":
    # Small shapes consistent with the module: obs_shape=32 features,
    # feature_dim=64, num_layers=2, batch=2. (num_filters is unused by
    # MLPEncoder.)  NOTE: the kernel cost is identical up to batch 128/256
    # (MXU rows), so callers in an RL loop should stack env/timestep
    # observations into larger batches for near-free throughput.
    batch, obs_shape, feature_dim, num_layers = 2, 32, 64, 2

    key = jax.random.PRNGKey(0)
    key, kobs = jax.random.split(key)
    obs = jax.random.normal(kobs, (batch, obs_shape), jnp.float32)

    params = init_mlp_encoder_params(key, obs_shape, feature_dim, num_layers)

    out = mlp_encoder_forward(obs, params)
    out = jax.block_until_ready(out)

    ref = mlp_encoder_reference(obs, params)
    assert out.shape == (batch, feature_dim), out.shape
    assert jnp.allclose(out, ref, atol=1e-5, rtol=1e-5), \
        float(jnp.max(jnp.abs(out - ref)))

    print("KERNEL_OK")
</pallas_src>

<mosaic_0001>
module attributes {stable_mosaic.version = 11 : i64} {
  func.func @_fused_mlp_kernel(%arg0: memref<8x32xf32, #tpu.memory_space<vmem>>, %arg1: memref<32x512xf32, #tpu.memory_space<vmem>>, %arg2: memref<1x512xf32, #tpu.memory_space<vmem>>, %arg3: memref<512x512xf32, #tpu.memory_space<vmem>>, %arg4: memref<1x512xf32, #tpu.memory_space<vmem>>, %arg5: memref<512x128xf32, #tpu.memory_space<vmem>>, %arg6: memref<1x128xf32, #tpu.memory_space<vmem>>, %arg7: memref<8x128xf32, #tpu.memory_space<vmem>>) attributes {dimension_semantics = [], scalar_prefetch = 0 : i64, scratch_operands = 0 : i64, tpu.core_type = #tpu.core_type<tc>} {
    %c0 = arith.constant 0 : index
    %c0_0 = arith.constant 0 : index
    %0 = vector.load %arg0[%c0, %c0_0] : memref<8x32xf32, #tpu.memory_space<vmem>>, vector<8x32xf32>
    %c0_1 = arith.constant 0 : index
    %c0_2 = arith.constant 0 : index
    %1 = vector.load %arg1[%c0_1, %c0_2] : memref<32x512xf32, #tpu.memory_space<vmem>>, vector<32x512xf32>
    %c0_3 = arith.constant 0 : index
    %c0_4 = arith.constant 0 : index
    %2 = vector.load %arg2[%c0_3, %c0_4] : memref<1x512xf32, #tpu.memory_space<vmem>>, vector<1x512xf32>
    %cst = arith.constant dense<0.000000e+00> : vector<8x512xf32>
    %3 = tpu.matmul %0, %1, %cst {dimension_numbers = #tpu.dot_dimension_numbers<[1], [0], [0], [1], [0, 0, 1, 1], [], []>} : vector<8x32xf32>, vector<32x512xf32>, vector<8x512xf32> -> vector<8x512xf32>
    %4 = vector.broadcast %2 : vector<1x512xf32> to vector<8x512xf32>
    %5 = arith.addf %3, %4 : vector<8x512xf32>
    %cst_5 = arith.constant 0.000000e+00 : f32
    %6 = vector.broadcast %cst_5 : f32 to vector<8x512xf32>
    %7 = arith.maximumf %5, %6 : vector<8x512xf32>
    %c0_6 = arith.constant 0 : index
    %c0_7 = arith.constant 0 : index
    %8 = vector.load %arg3[%c0_6, %c0_7] : memref<512x512xf32, #tpu.memory_space<vmem>>, vector<512x512xf32>
    %c0_8 = arith.constant 0 : index
    %c0_9 = arith.constant 0 : index
    %9 = vector.load %arg4[%c0_8, %c0_9] : memref<1x512xf32, #tpu.memory_space<vmem>>, vector<1x512xf32>
    %cst_10 = arith.constant dense<0.000000e+00> : vector<8x512xf32>
    %10 = tpu.matmul %7, %8, %cst_10 {dimension_numbers = #tpu.dot_dimension_numbers<[1], [0], [0], [1], [0, 0, 1, 1], [], []>} : vector<8x512xf32>, vector<512x512xf32>, vector<8x512xf32> -> vector<8x512xf32>
    %11 = vector.broadcast %9 : vector<1x512xf32> to vector<8x512xf32>
    %12 = arith.addf %10, %11 : vector<8x512xf32>
    %cst_11 = arith.constant 0.000000e+00 : f32
    %13 = vector.broadcast %cst_11 : f32 to vector<8x512xf32>
    %14 = arith.maximumf %12, %13 : vector<8x512xf32>
    %c0_12 = arith.constant 0 : index
    %c0_13 = arith.constant 0 : index
    %15 = vector.load %arg5[%c0_12, %c0_13] : memref<512x128xf32, #tpu.memory_space<vmem>>, vector<512x128xf32>
    %c0_14 = arith.constant 0 : index
    %c0_15 = arith.constant 0 : index
    %16 = vector.load %arg6[%c0_14, %c0_15] : memref<1x128xf32, #tpu.memory_space<vmem>>, vector<1x128xf32>
    %cst_16 = arith.constant dense<0.000000e+00> : vector<8x128xf32>
    %17 = tpu.matmul %14, %15, %cst_16 {dimension_numbers = #tpu.dot_dimension_numbers<[1], [0], [0], [1], [0, 0, 1, 1], [], []>} : vector<8x512xf32>, vector<512x128xf32>, vector<8x128xf32> -> vector<8x128xf32>
    %18 = vector.broadcast %16 : vector<1x128xf32> to vector<8x128xf32>
    %19 = arith.addf %17, %18 : vector<8x128xf32>
    %cst_17 = arith.constant 0.000000e+00 : f32
    %20 = vector.broadcast %cst_17 : f32 to vector<8x128xf32>
    %21 = arith.maximumf %19, %20 : vector<8x128xf32>
    %c0_18 = arith.constant 0 : index
    %c0_19 = arith.constant 0 : index
    %22 = vector.load %arg7[%c0_18, %c0_19] : memref<8x128xf32, #tpu.memory_space<vmem>>, vector<8x128xf32>
    tpu.vector_store %arg7[%c0_18, %c0_19], %21 {strides = array<i32>} : memref<8x128xf32, #tpu.memory_space<vmem>>, vector<8x128xf32>,
    return
  }
}

</mosaic_0001>

<llo_original>
// kernel: tpu_custom_call.1
$region0: #{tpu_custom_call.1}
  #allocation0 [shape = 'u32[]', space=smem, size = 0x4, offset = 0x4, fixed_abs, tag = 'smem constant byte address 0x4 - core index']
  #allocation1 [shape = 'u32[144,128]{1,0:T(1,128)}', space=vmem, size = 0x12000, scoped, tag = 'internal scratch']
  %s0 = inlined_call_operand.hbm [shape: f32[8,32], index: 0, kind: input, shape index: {}]
  %s1 = inlined_call_operand.hbm [shape: f32[32,512], index: 1, kind: input, shape index: {}]
  %s2 = inlined_call_operand.vmem [shape: f32[1,512], index: 2, kind: input, shape index: {}]
  %s3 = inlined_call_operand.hbm [shape: f32[512,512], index: 3, kind: input, shape index: {}]
  %s4 = inlined_call_operand.vmem [shape: f32[1,512], index: 4, kind: input, shape index: {}]
  %s5 = inlined_call_operand.hbm [shape: f32[512,128], index: 5, kind: input, shape index: {}]
  %s6 = inlined_call_operand.vmem [shape: f32[1,128], index: 6, kind: input, shape index: {}]
  %s7 = inlined_call_operand.hbm [shape: f32[8,128], index: 7, kind: output, shape index: {}]
  %s8 = sld [smem:[#allocation0]]
  $region54: #{tpu_custom_call.1} parent=0
    _
  %s10 = ssub.s32 1, %s8
  %s11 = scalar_select 0, %s10, %s8
  $region1: #{tpu_custom_call.1} parent=0
    #allocation2 [shape = 'u8[4096]{0}', space=vmem, size = 0x1000, scoped, tag = 'input window, operand 0, single buffered']
    #allocation3 [shape = 's32[1]{0}', space=sflag, size = 0x4, scoped, tag = 'scoped memory for tpu_custom_call.1']
    #allocation4 [shape = 's32[1]{0}', space=sflag, size = 0x4, scoped, tag = 'scoped memory for tpu_custom_call.1']
    #allocation5 [shape = 'u8[65536]{0}', space=vmem, size = 0x10000, scoped, tag = 'input window, operand 1, single buffered']
    #allocation6 [shape = 's32[1]{0}', space=sflag, size = 0x4, scoped, tag = 'scoped memory for tpu_custom_call.1']
    #allocation7 [shape = 'u8[1048576]{0}', space=vmem, size = 0x100000, scoped, tag = 'input window, operand 3, single buffered']
    #allocation8 [shape = 'u8[262144]{0}', space=vmem, size = 0x40000, scoped, tag = 'input window, operand 5, single buffered']
    #allocation9 [shape = 's32[1]{0}', space=sflag, size = 0x4, scoped, tag = 'scoped memory for tpu_custom_call.1']
    #allocation10 [shape = 'u8[4096]{0}', space=vmem, size = 0x1000, scoped, tag = 'output window, operand 0, single buffered']
    %12 = vsyncpa [#allocation3], 0
    %13 = vsyncpa [#allocation6], 0
    %14 = vsyncpa [#allocation9], 0
    %15 = vsyncpa [#allocation4], 0
    // Predicated region
    $region2: #{tpu_custom_call.1} parent=1 // pred_check
      _
    $region3: #{tpu_custom_call.1} parent=1 // pred_check_branch
      %17 = sbr.rel (0) target = $region5
    $region4: #{tpu_custom_call.1} parent=1 // pred_region
      %s19 = ssub.s32 128, 128
      %20 = vsyncadd [#allocation3], %s19
      %s22 = sshll.u32 [#allocation2], 4
      %s23 = int_to_ptr.vmem [resolvable:$true] %s22
      %25 = dma.hbm_to_vmem [thread:$0]  %s0, 128, %s23, [#allocation3]
    $region5: #{tpu_custom_call.1} parent=1 // pred_fallthru
      _
    // Predicated region
    $region6: #{tpu_custom_call.1} parent=1 // pred_check
      _
    $region7: #{tpu_custom_call.1} parent=1 // pred_check_branch
      %27 = sbr.rel (0) target = $region9
    $region8: #{tpu_custom_call.1} parent=1 // pred_region
      %s29 = ssub.s32 2048, 2048
      %30 = vsyncadd [#allocation6], %s29
      %s31 = sshll.u32 [#allocation5], 4
      %s32 = int_to_ptr.vmem [resolvable:$true] %s31
      %37 = dma.hbm_to_vmem [thread:$0]  %s1, 2048, %s32, [#allocation6], 512, 512, 32
    $region9: #{tpu_custom_call.1} parent=1 // pred_fallthru
      _
    // Predicated region
    $region10: #{tpu_custom_call.1} parent=1 // pred_check
      _
    $region11: #{tpu_custom_call.1} parent=1 // pred_check_branch
      %39 = sbr.rel (0) target = $region13
    $region12: #{tpu_custom_call.1} parent=1 // pred_region
      _
    $region13: #{tpu_custom_call.1} parent=1 // pred_fallthru
      _
    // Predicated region
    $region14: #{tpu_custom_call.1} parent=1 // pred_check
      _
    $region15: #{tpu_custom_call.1} parent=1 // pred_check_branch
      %41 = sbr.rel (0) target = $region17
    $region16: #{tpu_custom_call.1} parent=1 // pred_region
      %s43 = ssub.s32 32768, 32768
      %44 = vsyncadd [#allocation6], %s43
      %s45 = sshll.u32 [#allocation7], 4
      %s46 = int_to_ptr.vmem [resolvable:$true] %s45
      %51 = dma.hbm_to_vmem [thread:$0]  %s3, 32768, %s46, [#allocation6], 512, 512, 32
    $region17: #{tpu_custom_call.1} parent=1 // pred_fallthru
      _
    // Predicated region
    $region18: #{tpu_custom_call.1} parent=1 // pred_check
      _
    $region19: #{tpu_custom_call.1} parent=1 // pred_check_branch
      %53 = sbr.rel (0) target = $region21
    $region20: #{tpu_custom_call.1} parent=1 // pred_region
      _
    $region21: #{tpu_custom_call.1} parent=1 // pred_fallthru
      _
    // Predicated region
    $region22: #{tpu_custom_call.1} parent=1 // pred_check
      _
    $region23: #{tpu_custom_call.1} parent=1 // pred_check_branch
      %55 = sbr.rel (0) target = $region25
    $region24: #{tpu_custom_call.1} parent=1 // pred_region
      %s57 = ssub.s32 8192, 8192
      %58 = vsyncadd [#allocation9], %s57
      %s59 = sshll.u32 [#allocation8], 4
      %s60 = int_to_ptr.vmem [resolvable:$true] %s59
      %65 = dma.hbm_to_vmem [thread:$0]  %s5, 8192, %s60, [#allocation9], 128, 128, 8
    $region25: #{tpu_custom_call.1} parent=1 // pred_fallthru
      _
    // Predicated region
    $region26: #{tpu_custom_call.1} parent=1 // pred_check
      _
    $region27: #{tpu_custom_call.1} parent=1 // pred_check_branch
      %67 = sbr.rel (0) target = $region29
    $region28: #{tpu_custom_call.1} parent=1 // pred_region
      _
    $region29: #{tpu_custom_call.1} parent=1 // pred_fallthru
      _
    // Predicated region
    $region30: #{tpu_custom_call.1} parent=1 // pred_check
      _
    $region31: #{tpu_custom_call.1} parent=1 // pred_check_branch
      %69 = sbr.rel (0) target = $region33
    $region32: #{tpu_custom_call.1} parent=1 // pred_region
      %70 = dma.done [#allocation3], 128
    $region33: #{tpu_custom_call.1} parent=1 // pred_fallthru
      _
    // Predicated region
    $region34: #{tpu_custom_call.1} parent=1 // pred_check
      _
    $region35: #{tpu_custom_call.1} parent=1 // pred_check_branch
      %72 = sbr.rel (0) target = $region37
    $region36: #{tpu_custom_call.1} parent=1 // pred_region
      %73 = dma.done [#allocation6], 2048
    $region37: #{tpu_custom_call.1} parent=1 // pred_fallthru
      _
    // Predicated region
    $region38: #{tpu_custom_call.1} parent=1 // pred_check
      _
    $region39: #{tpu_custom_call.1} parent=1 // pred_check_branch
      %75 = sbr.rel (0) target = $region41
    $region40: #{tpu_custom_call.1} parent=1 // pred_region
      %76 = dma.done [#allocation6], 32768
    $region41: #{tpu_custom_call.1} parent=1 // pred_fallthru
      _
    // Predicated region
    $region42: #{tpu_custom_call.1} parent=1 // pred_check
      _
    $region43: #{tpu_custom_call.1} parent=1 // pred_check_branch
      %78 = sbr.rel (0) target = $region45
    $region44: #{tpu_custom_call.1} parent=1 // pred_region
      %79 = dma.done [#allocation9], 8192
    $region45: #{tpu_custom_call.1} parent=1 // pred_fallthru
      _
    %v80 = vld [vmem:[#allocation2] sm:$0xff]
    %v81 = vld [vmem:[#allocation5] sm:$0xff]
    %v82 = vld [vmem:[#allocation5 + $0x8] sm:$0xff]
    %v83 = vld [vmem:[#allocation5 + $0x10] sm:$0xff]
    %v84 = vld [vmem:[#allocation5 + $0x18] sm:$0xff]
    %v85 = vld [vmem:[#allocation5 + $0x20] sm:$0xff]
    %v86 = vld [vmem:[#allocation5 + $0x28] sm:$0xff]
    %v87 = vld [vmem:[#allocation5 + $0x30] sm:$0xff]
    %v88 = vld [vmem:[#allocation5 + $0x38] sm:$0xff]
    %v89 = vld [vmem:[#allocation5 + $0x40] sm:$0xff]
    %v90 = vld [vmem:[#allocation5 + $0x48] sm:$0xff]
    %v91 = vld [vmem:[#allocation5 + $0x50] sm:$0xff]
    %v92 = vld [vmem:[#allocation5 + $0x58] sm:$0xff]
    %v93 = vld [vmem:[#allocation5 + $0x60] sm:$0xff]
    %v94 = vld [vmem:[#allocation5 + $0x68] sm:$0xff]
    %v95 = vld [vmem:[#allocation5 + $0x70] sm:$0xff]
    %v96 = vld [vmem:[#allocation5 + $0x78] sm:$0xff]
    %v97 = vld [vmem:[%s2] sm:$0xf]
    %v99 = vlaneseq
    %v100 = vshrl.u32 %v99, 7
    %v101 = vsub.s32 0, %v100
    %v102 = vrot.slane %v97, %v101
    %v103 = vlaneseq
    %v104 = vshrl.u32 %v103, 7
    %v105 = vsub.s32 1, %v104
    %v106 = vrot.slane %v97, %v105
    %v107 = vlaneseq
    %v108 = vshrl.u32 %v107, 7
    %v109 = vsub.s32 2, %v108
    %v110 = vrot.slane %v97, %v109
    %v111 = vlaneseq
    %v112 = vshrl.u32 %v111, 7
    %v113 = vsub.s32 3, %v112
    %v114 = vrot.slane %v97, %v113
    %vm119 = vcmask 261120
    %v121 = vsel %vm119, %v80, 0
    %123 = vmatprep.subr.mxu0 %v82
    %124 = vmatpush1.msra.mxu0 %v81
    %125 = vmatprep.subr.mxu0 %v86
    %126 = vmatpush1.msra.mxu0 %v85
    %127 = vmatprep.subr.mxu0 %v90
    %128 = vmatpush1.msra.mxu0 %v89
    %129 = vmatprep.subr.mxu0 %v94
    %130 = vmatpush1.msra.mxu0 %v93
    %131 = vmatprep.subr.mxu0 0.0
    %132 = vmatpush1.msra.mxu0 0.0
    %133 = vmatprep.subr.mxu0 0.0
    %134 = vmatpush1.msra.mxu0 0.0
    %135 = vmatprep.subr.mxu0 0.0
    %136 = vmatpush1.msra.mxu0 0.0
    %137 = vmatprep.subr.mxu0 0.0
    %138 = vmatpush1.msra.mxu0 0.0
    %139 = vmatprep.subr.mxu0 0.0
    %140 = vmatpush1.msra.mxu0 0.0
    %141 = vmatprep.subr.mxu0 0.0
    %142 = vmatpush1.msra.mxu0 0.0
    %143 = vmatprep.subr.mxu0 0.0
    %144 = vmatpush1.msra.mxu0 0.0
    %145 = vmatprep.subr.mxu0 0.0
    %146 = vmatpush1.msra.mxu0 0.0
    %147 = vmatprep.subr.mxu0 0.0
    %148 = vmatpush1.msra.mxu0 0.0
    %149 = vmatprep.subr.mxu0 0.0
    %150 = vmatpush1.msra.mxu0 0.0
    %151 = vmatprep.subr.mxu0 0.0
    %152 = vmatpush1.msra.mxu0 0.0
    %153 = vmatprep.subr.mxu0 0.0
    %154 = vmatpush1.msra.mxu0 0.0
    %155 = vmatprep.subr.mxu0 0.0
    %156 = vmatpush1.msra.mxu0 0.0
    %157 = vmatprep.subr.mxu0 0.0
    %158 = vmatpush1.msra.mxu0 0.0
    %159 = vmatprep.subr.mxu0 0.0
    %160 = vmatpush1.msra.mxu0 0.0
    %161 = vmatprep.subr.mxu0 0.0
    %162 = vmatpush1.msra.mxu0 0.0
    %163 = vmatprep.subr.mxu0 0.0
    %164 = vmatpush1.msra.mxu0 0.0
    %165 = vmatprep.subr.mxu0 0.0
    %166 = vmatpush1.msra.mxu0 0.0
    %167 = vmatprep.subr.mxu0 0.0
    %168 = vmatpush1.msra.mxu0 0.0
    %169 = vmatprep.subr.mxu0 0.0
    %170 = vmatpush1.msra.mxu0 0.0
    %171 = vmatprep.subr.mxu0 0.0
    %172 = vmatpush1.msra.mxu0 0.0
    %173 = vmatprep.subr.mxu0 0.0
    %174 = vmatpush1.msra.mxu0 0.0
    %175 = vmatprep.subr.mxu0 0.0
    %176 = vmatpush1.msra.mxu0 0.0
    %177 = vmatprep.subr.mxu0 0.0
    %178 = vmatpush1.msra.mxu0 0.0
    %179 = vmatprep.subr.mxu0 0.0
    %180 = vmatpush1.msra.mxu0 0.0
    %181 = vmatprep.subr.mxu0 0.0
    %182 = vmatpush1.msra.mxu0 0.0
    %183 = vmatprep.subr.mxu0 0.0
    %184 = vmatpush1.msra.mxu0 0.0
    %185 = vmatprep.subr.mxu0 0.0
    %186 = vmatpush1.msra.mxu0 0.0
    %187 = vmatprep.mubr.f32.mxu0 0.0
    %188 = vmatmul.mubr.f32.gmra.mrb[0].mxu0 %v121
    %v189 = vpop.f32.mrb[0].mxu0
    %v190 = vadd.f32 %v102, %v189
    %v191 = vpop.f32.mrb[0].mxu0
    %v192 = vadd.f32 %v106, %v191
    %193 = vdwg.mxu0
    %194 = vmatprep.subr.mxu0 %v84
    %195 = vmatpush1.msra.mxu0 %v83
    %196 = vmatprep.subr.mxu0 %v88
    %197 = vmatpush1.msra.mxu0 %v87
    %198 = vmatprep.subr.mxu0 %v92
    %199 = vmatpush1.msra.mxu0 %v91
    %200 = vmatprep.subr.mxu0 %v96
    %201 = vmatpush1.msra.mxu0 %v95
    %202 = vmatprep.subr.mxu0 0.0
    %203 = vmatpush1.msra.mxu0 0.0
    %204 = vmatprep.subr.mxu0 0.0
    %205 = vmatpush1.msra.mxu0 0.0
    %206 = vmatprep.subr.mxu0 0.0
    %207 = vmatpush1.msra.mxu0 0.0
    %208 = vmatprep.subr.mxu0 0.0
    %209 = vmatpush1.msra.mxu0 0.0
    %210 = vmatprep.subr.mxu0 0.0
    %211 = vmatpush1.msra.mxu0 0.0
    %212 = vmatprep.subr.mxu0 0.0
    %213 = vmatpush1.msra.mxu0 0.0
    %214 = vmatprep.subr.mxu0 0.0
    %215 = vmatpush1.msra.mxu0 0.0
    %216 = vmatprep.subr.mxu0 0.0
    %217 = vmatpush1.msra.mxu0 0.0
    %218 = vmatprep.subr.mxu0 0.0
    %219 = vmatpush1.msra.mxu0 0.0
    %220 = vmatprep.subr.mxu0 0.0
    %221 = vmatpush1.msra.mxu0 0.0
    %222 = vmatprep.subr.mxu0 0.0
    %223 = vmatpush1.msra.mxu0 0.0
    %224 = vmatprep.subr.mxu0 0.0
    %225 = vmatpush1.msra.mxu0 0.0
    %226 = vmatprep.subr.mxu0 0.0
    %227 = vmatpush1.msra.mxu0 0.0
    %228 = vmatprep.subr.mxu0 0.0
    %229 = vmatpush1.msra.mxu0 0.0
    %230 = vmatprep.subr.mxu0 0.0
    %231 = vmatpush1.msra.mxu0 0.0
    %232 = vmatprep.subr.mxu0 0.0
    %233 = vmatpush1.msra.mxu0 0.0
    %234 = vmatprep.subr.mxu0 0.0
    %235 = vmatpush1.msra.mxu0 0.0
    %236 = vmatprep.subr.mxu0 0.0
    %237 = vmatpush1.msra.mxu0 0.0
    %238 = vmatprep.subr.mxu0 0.0
    %239 = vmatpush1.msra.mxu0 0.0
    %240 = vmatprep.subr.mxu0 0.0
    %241 = vmatpush1.msra.mxu0 0.0
    %242 = vmatprep.subr.mxu0 0.0
    %243 = vmatpush1.msra.mxu0 0.0
    %244 = vmatprep.subr.mxu0 0.0
    %245 = vmatpush1.msra.mxu0 0.0
    %246 = vmatprep.subr.mxu0 0.0
    %247 = vmatpush1.msra.mxu0 0.0
    %248 = vmatprep.subr.mxu0 0.0
    %249 = vmatpush1.msra.mxu0 0.0
    %250 = vmatprep.subr.mxu0 0.0
    %251 = vmatpush1.msra.mxu0 0.0
    %252 = vmatprep.subr.mxu0 0.0
    %253 = vmatpush1.msra.mxu0 0.0
    %254 = vmatprep.subr.mxu0 0.0
    %255 = vmatpush1.msra.mxu0 0.0
    %256 = vmatprep.subr.mxu0 0.0
    %257 = vmatpush1.msra.mxu0 0.0
    %258 = vmatprep.mubr.f32.mxu0 0.0
    %259 = vmatmul.mubr.f32.gmra.mrb[0].mxu0 %v121
    %v260 = vpop.f32.mrb[0].mxu0
    %v261 = vadd.f32 %v110, %v260
    %v262 = vpop.f32.mrb[0].mxu0
    %v263 = vadd.f32 %v114, %v262
    %264 = vdwg.mxu0
    %v265 = vmax.f32 %v190, 0.0
    %v266 = vmax.f32 %v192, 0.0
    %v267 = vmax.f32 %v261, 0.0
    %v268 = vmax.f32 %v263, 0.0
    %v269 = vld [vmem:[#allocation7] sm:$0xff]
    %v270 = vld [vmem:[#allocation7 + $0x8] sm:$0xff]
    %v271 = vld [vmem:[#allocation7 + $0x10] sm:$0xff]
    %v272 = vld [vmem:[#allocation7 + $0x18] sm:$0xff]
    %v273 = vld [vmem:[#allocation7 + $0x20] sm:$0xff]
    %v274 = vld [vmem:[#allocation7 + $0x28] sm:$0xff]
    %v275 = vld [vmem:[#allocation7 + $0x30] sm:$0xff]
    %v276 = vld [vmem:[#allocation7 + $0x38] sm:$0xff]
    %v277 = vld [vmem:[#allocation7 + $0x40] sm:$0xff]
    %v278 = vld [vmem:[#allocation7 + $0x48] sm:$0xff]
    %v279 = vld [vmem:[#allocation7 + $0x50] sm:$0xff]
    %v280 = vld [vmem:[#allocation7 + $0x58] sm:$0xff]
    %v281 = vld [vmem:[#allocation7 + $0x60] sm:$0xff]
    %v282 = vld [vmem:[#allocation7 + $0x68] sm:$0xff]
    %v283 = vld [vmem:[#allocation7 + $0x70] sm:$0xff]
    %v284 = vld [vmem:[#allocation7 + $0x78] sm:$0xff]
    %v285 = vld [vmem:[#allocation7 + $0x80] sm:$0xff]
    %v286 = vld [vmem:[#allocation7 + $0x88] sm:$0xff]
    %v287 = vld [vmem:[#allocation7 + $0x90] sm:$0xff]
    %v288 = vld [vmem:[#allocation7 + $0x98] sm:$0xff]
    %v289 = vld [vmem:[#allocation7 + $0xa0] sm:$0xff]
    %v290 = vld [vmem:[#allocation7 + $0xa8] sm:$0xff]
    %v291 = vld [vmem:[#allocation7 + $0xb0] sm:$0xff]
    %v292 = vld [vmem:[#allocation7 + $0xb8] sm:$0xff]
    %v293 = vld [vmem:[#allocation7 + $0xc0] sm:$0xff]
    %v294 = vld [vmem:[#allocation7 + $0xc8] sm:$0xff]
    %v295 = vld [vmem:[#allocation7 + $0xd0] sm:$0xff]
    %v296 = vld [vmem:[#allocation7 + $0xd8] sm:$0xff]
    %v297 = vld [vmem:[#allocation7 + $0xe0] sm:$0xff]
    %v298 = vld [vmem:[#allocation7 + $0xe8] sm:$0xff]
    %v299 = vld [vmem:[#allocation7 + $0xf0] sm:$0xff]
    %v300 = vld [vmem:[#allocation7 + $0xf8] sm:$0xff]
    %v301 = vld [vmem:[#allocation7 + $0x100] sm:$0xff]
    %v302 = vld [vmem:[#allocation7 + $0x108] sm:$0xff]
    %v303 = vld [vmem:[#allocation7 + $0x110] sm:$0xff]
    %v304 = vld [vmem:[#allocation7 + $0x118] sm:$0xff]
    %v305 = vld [vmem:[#allocation7 + $0x120] sm:$0xff]
    %v306 = vld [vmem:[#allocation7 + $0x128] sm:$0xff]
    %v307 = vld [vmem:[#allocation7 + $0x130] sm:$0xff]
    %v308 = vld [vmem:[#allocation7 + $0x138] sm:$0xff]
    %v309 = vld [vmem:[#allocation7 + $0x140] sm:$0xff]
    %v310 = vld [vmem:[#allocation7 + $0x148] sm:$0xff]
    %v311 = vld [vmem:[#allocation7 + $0x150] sm:$0xff]
    %v312 = vld [vmem:[#allocation7 + $0x158] sm:$0xff]
    %v313 = vld [vmem:[#allocation7 + $0x160] sm:$0xff]
    %v314 = vld [vmem:[#allocation7 + $0x168] sm:$0xff]
    %v315 = vld [vmem:[#allocation7 + $0x170] sm:$0xff]
    %v316 = vld [vmem:[#allocation7 + $0x178] sm:$0xff]
    %v317 = vld [vmem:[#allocation7 + $0x180] sm:$0xff]
    %v318 = vld [vmem:[#allocation7 + $0x188] sm:$0xff]
    %v319 = vld [vmem:[#allocation7 + $0x190] sm:$0xff]
    %v320 = vld [vmem:[#allocation7 + $0x198] sm:$0xff]
    %v321 = vld [vmem:[#allocation7 + $0x1a0] sm:$0xff]
    %v322 = vld [vmem:[#allocation7 + $0x1a8] sm:$0xff]
    %v323 = vld [vmem:[#allocation7 + $0x1b0] sm:$0xff]
    %v324 = vld [vmem:[#allocation7 + $0x1b8] sm:$0xff]
    %v325 = vld [vmem:[#allocation7 + $0x1c0] sm:$0xff]
    %v326 = vld [vmem:[#allocation7 + $0x1c8] sm:$0xff]
    %v327 = vld [vmem:[#allocation7 + $0x1d0] sm:$0xff]
    %v328 = vld [vmem:[#allocation7 + $0x1d8] sm:$0xff]
    %v329 = vld [vmem:[#allocation7 + $0x1e0] sm:$0xff]
    %v330 = vld [vmem:[#allocation7 + $0x1e8] sm:$0xff]
    %v331 = vld [vmem:[#allocation7 + $0x1f0] sm:$0xff]
    %v332 = vld [vmem:[#allocation7 + $0x1f8] sm:$0xff]
    %v333 = vld [vmem:[#allocation7 + $0x200] sm:$0xff]
    %v334 = vld [vmem:[#allocation7 + $0x208] sm:$0xff]
    %v335 = vld [vmem:[#allocation7 + $0x210] sm:$0xff]
    %v336 = vld [vmem:[#allocation7 + $0x218] sm:$0xff]
    %v337 = vld [vmem:[#allocation7 + $0x220] sm:$0xff]
    %v338 = vld [vmem:[#allocation7 + $0x228] sm:$0xff]
    %v339 = vld [vmem:[#allocation7 + $0x230] sm:$0xff]
    %v340 = vld [vmem:[#allocation7 + $0x238] sm:$0xff]
    %v341 = vld [vmem:[#allocation7 + $0x240] sm:$0xff]
    %v342 = vld [vmem:[#allocation7 + $0x248] sm:$0xff]
    %v343 = vld [vmem:[#allocation7 + $0x250] sm:$0xff]
    %v344 = vld [vmem:[#allocation7 + $0x258] sm:$0xff]
    %v345 = vld [vmem:[#allocation7 + $0x260] sm:$0xff]
    %v346 = vld [vmem:[#allocation7 + $0x268] sm:$0xff]
    %v347 = vld [vmem:[#allocation7 + $0x270] sm:$0xff]
    %v348 = vld [vmem:[#allocation7 + $0x278] sm:$0xff]
    %v349 = vld [vmem:[#allocation7 + $0x280] sm:$0xff]
    %v350 = vld [vmem:[#allocation7 + $0x288] sm:$0xff]
    %v351 = vld [vmem:[#allocation7 + $0x290] sm:$0xff]
    %v352 = vld [vmem:[#allocation7 + $0x298] sm:$0xff]
    %v353 = vld [vmem:[#allocation7 + $0x2a0] sm:$0xff]
    %v354 = vld [vmem:[#allocation7 + $0x2a8] sm:$0xff]
    %v355 = vld [vmem:[#allocation7 + $0x2b0] sm:$0xff]
    %v356 = vld [vmem:[#allocation7 + $0x2b8] sm:$0xff]
    %v357 = vld [vmem:[#allocation7 + $0x2c0] sm:$0xff]
    %v358 = vld [vmem:[#allocation7 + $0x2c8] sm:$0xff]
    %v359 = vld [vmem:[#allocation7 + $0x2d0] sm:$0xff]
    %v360 = vld [vmem:[#allocation7 + $0x2d8] sm:$0xff]
    %v361 = vld [vmem:[#allocation7 + $0x2e0] sm:$0xff]
    %v362 = vld [vmem:[#allocation7 + $0x2e8] sm:$0xff]
    %v363 = vld [vmem:[#allocation7 + $0x2f0] sm:$0xff]
    %v364 = vld [vmem:[#allocation7 + $0x2f8] sm:$0xff]
    %v365 = vld [vmem:[#allocation7 + $0x300] sm:$0xff]
    %v366 = vld [vmem:[#allocation7 + $0x308] sm:$0xff]
    %v367 = vld [vmem:[#allocation7 + $0x310] sm:$0xff]
    %v368 = vld [vmem:[#allocation7 + $0x318] sm:$0xff]
    %v369 = vld [vmem:[#allocation7 + $0x320] sm:$0xff]
    %v370 = vld [vmem:[#allocation7 + $0x328] sm:$0xff]
    %v371 = vld [vmem:[#allocation7 + $0x330] sm:$0xff]
    %v372 = vld [vmem:[#allocation7 + $0x338] sm:$0xff]
    %v373 = vld [vmem:[#allocation7 + $0x340] sm:$0xff]
    %v374 = vld [vmem:[#allocation7 + $0x348] sm:$0xff]
    %v375 = vld [vmem:[#allocation7 + $0x350] sm:$0xff]
    %v376 = vld [vmem:[#allocation7 + $0x358] sm:$0xff]
    %v377 = vld [vmem:[#allocation7 + $0x360] sm:$0xff]
    %v378 = vld [vmem:[#allocation7 + $0x368] sm:$0xff]
    %v379 = vld [vmem:[#allocation7 + $0x370] sm:$0xff]
    %v380 = vld [vmem:[#allocation7 + $0x378] sm:$0xff]
    %v381 = vld [vmem:[#allocation7 + $0x380] sm:$0xff]
    %v382 = vld [vmem:[#allocation7 + $0x388] sm:$0xff]
    %v383 = vld [vmem:[#allocation7 + $0x390] sm:$0xff]
    %v384 = vld [vmem:[#allocation7 + $0x398] sm:$0xff]
    %v385 = vld [vmem:[#allocation7 + $0x3a0] sm:$0xff]
    %v386 = vld [vmem:[#allocation7 + $0x3a8] sm:$0xff]
    %v387 = vld [vmem:[#allocation7 + $0x3b0] sm:$0xff]
    %v388 = vld [vmem:[#allocation7 + $0x3b8] sm:$0xff]
    %v389 = vld [vmem:[#allocation7 + $0x3c0] sm:$0xff]
    %v390 = vld [vmem:[#allocation7 + $0x3c8] sm:$0xff]
    %v391 = vld [vmem:[#allocation7 + $0x3d0] sm:$0xff]
    %v392 = vld [vmem:[#allocation7 + $0x3d8] sm:$0xff]
    %v393 = vld [vmem:[#allocation7 + $0x3e0] sm:$0xff]
    %v394 = vld [vmem:[#allocation7 + $0x3e8] sm:$0xff]
    %v395 = vld [vmem:[#allocation7 + $0x3f0] sm:$0xff]
    %v396 = vld [vmem:[#allocation7 + $0x3f8] sm:$0xff]
    %v397 = vld [vmem:[#allocation7 + $0x400] sm:$0xff]
    %v398 = vld [vmem:[#allocation7 + $0x408] sm:$0xff]
    %v399 = vld [vmem:[#allocation7 + $0x410] sm:$0xff]
    %v400 = vld [vmem:[#allocation7 + $0x418] sm:$0xff]
    %v401 = vld [vmem:[#allocation7 + $0x420] sm:$0xff]
    %v402 = vld [vmem:[#allocation7 + $0x428] sm:$0xff]
    %v403 = vld [vmem:[#allocation7 + $0x430] sm:$0xff]
    %v404 = vld [vmem:[#allocation7 + $0x438] sm:$0xff]
    %v405 = vld [vmem:[#allocation7 + $0x440] sm:$0xff]
    %v406 = vld [vmem:[#allocation7 + $0x448] sm:$0xff]
    %v407 = vld [vmem:[#allocation7 + $0x450] sm:$0xff]
    %v408 = vld [vmem:[#allocation7 + $0x458] sm:$0xff]
    %v409 = vld [vmem:[#allocation7 + $0x460] sm:$0xff]
    %v410 = vld [vmem:[#allocation7 + $0x468] sm:$0xff]
    %v411 = vld [vmem:[#allocation7 + $0x470] sm:$0xff]
    %v412 = vld [vmem:[#allocation7 + $0x478] sm:$0xff]
    %v413 = vld [vmem:[#allocation7 + $0x480] sm:$0xff]
    %v414 = vld [vmem:[#allocation7 + $0x488] sm:$0xff]
    %v415 = vld [vmem:[#allocation7 + $0x490] sm:$0xff]
    %v416 = vld [vmem:[#allocation7 + $0x498] sm:$0xff]
    %v417 = vld [vmem:[#allocation7 + $0x4a0] sm:$0xff]
    %v418 = vld [vmem:[#allocation7 + $0x4a8] sm:$0xff]
    %v419 = vld [vmem:[#allocation7 + $0x4b0] sm:$0xff]
    %v420 = vld [vmem:[#allocation7 + $0x4b8] sm:$0xff]
    %v421 = vld [vmem:[#allocation7 + $0x4c0] sm:$0xff]
    %v422 = vld [vmem:[#allocation7 + $0x4c8] sm:$0xff]
    %v423 = vld [vmem:[#allocation7 + $0x4d0] sm:$0xff]
    %v424 = vld [vmem:[#allocation7 + $0x4d8] sm:$0xff]
    %v425 = vld [vmem:[#allocation7 + $0x4e0] sm:$0xff]
    %v426 = vld [vmem:[#allocation7 + $0x4e8] sm:$0xff]
    %v427 = vld [vmem:[#allocation7 + $0x4f0] sm:$0xff]
    %v428 = vld [vmem:[#allocation7 + $0x4f8] sm:$0xff]
    %v429 = vld [vmem:[#allocation7 + $0x500] sm:$0xff]
    %v430 = vld [vmem:[#allocation7 + $0x508] sm:$0xff]
    %v431 = vld [vmem:[#allocation7 + $0x510] sm:$0xff]
    %v432 = vld [vmem:[#allocation7 + $0x518] sm:$0xff]
    %v433 = vld [vmem:[#allocation7 + $0x520] sm:$0xff]
    %v434 = vld [vmem:[#allocation7 + $0x528] sm:$0xff]
    %v435 = vld [vmem:[#allocation7 + $0x530] sm:$0xff]
    %v436 = vld [vmem:[#allocation7 + $0x538] sm:$0xff]
    %v437 = vld [vmem:[#allocation7 + $0x540] sm:$0xff]
    %v438 = vld [vmem:[#allocation7 + $0x548] sm:$0xff]
    %v439 = vld [vmem:[#allocation7 + $0x550] sm:$0xff]
    %v440 = vld [vmem:[#allocation7 + $0x558] sm:$0xff]
    %v441 = vld [vmem:[#allocation7 + $0x560] sm:$0xff]
    %v442 = vld [vmem:[#allocation7 + $0x568] sm:$0xff]
    %v443 = vld [vmem:[#allocation7 + $0x570] sm:$0xff]
    %v444 = vld [vmem:[#allocation7 + $0x578] sm:$0xff]
    %v445 = vld [vmem:[#allocation7 + $0x580] sm:$0xff]
    %v446 = vld [vmem:[#allocation7 + $0x588] sm:$0xff]
    %v447 = vld [vmem:[#allocation7 + $0x590] sm:$0xff]
    %v448 = vld [vmem:[#allocation7 + $0x598] sm:$0xff]
    %v449 = vld [vmem:[#allocation7 + $0x5a0] sm:$0xff]
    %v450 = vld [vmem:[#allocation7 + $0x5a8] sm:$0xff]
    %v451 = vld [vmem:[#allocation7 + $0x5b0] sm:$0xff]
    %v452 = vld [vmem:[#allocation7 + $0x5b8] sm:$0xff]
    %v453 = vld [vmem:[#allocation7 + $0x5c0] sm:$0xff]
    %v454 = vld [vmem:[#allocation7 + $0x5c8] sm:$0xff]
    %v455 = vld [vmem:[#allocation7 + $0x5d0] sm:$0xff]
    %v456 = vld [vmem:[#allocation7 + $0x5d8] sm:$0xff]
    %v457 = vld [vmem:[#allocation7 + $0x5e0] sm:$0xff]
    %v458 = vld [vmem:[#allocation7 + $0x5e8] sm:$0xff]
    %v459 = vld [vmem:[#allocation7 + $0x5f0] sm:$0xff]
    %v460 = vld [vmem:[#allocation7 + $0x5f8] sm:$0xff]
    %v461 = vld [vmem:[#allocation7 + $0x600] sm:$0xff]
    %v462 = vld [vmem:[#allocation7 + $0x608] sm:$0xff]
    %v463 = vld [vmem:[#allocation7 + $0x610] sm:$0xff]
    %v464 = vld [vmem:[#allocation7 + $0x618] sm:$0xff]
    %v465 = vld [vmem:[#allocation7 + $0x620] sm:$0xff]
    %v466 = vld [vmem:[#allocation7 + $0x628] sm:$0xff]
    %v467 = vld [vmem:[#allocation7 + $0x630] sm:$0xff]
    %v468 = vld [vmem:[#allocation7 + $0x638] sm:$0xff]
    %v469 = vld [vmem:[#allocation7 + $0x640] sm:$0xff]
    %v470 = vld [vmem:[#allocation7 + $0x648] sm:$0xff]
    %v471 = vld [vmem:[#allocation7 + $0x650] sm:$0xff]
    %v472 = vld [vmem:[#allocation7 + $0x658] sm:$0xff]
    %v473 = vld [vmem:[#allocation7 + $0x660] sm:$0xff]
    %v474 = vld [vmem:[#allocation7 + $0x668] sm:$0xff]
    %v475 = vld [vmem:[#allocation7 + $0x670] sm:$0xff]
    %v476 = vld [vmem:[#allocation7 + $0x678] sm:$0xff]
    %v477 = vld [vmem:[#allocation7 + $0x680] sm:$0xff]
    %v478 = vld [vmem:[#allocation7 + $0x688] sm:$0xff]
    %v479 = vld [vmem:[#allocation7 + $0x690] sm:$0xff]
    %v480 = vld [vmem:[#allocation7 + $0x698] sm:$0xff]
    %v481 = vld [vmem:[#allocation7 + $0x6a0] sm:$0xff]
    %v482 = vld [vmem:[#allocation7 + $0x6a8] sm:$0xff]
    %v483 = vld [vmem:[#allocation7 + $0x6b0] sm:$0xff]
    %v484 = vld [vmem:[#allocation7 + $0x6b8] sm:$0xff]
    %v485 = vld [vmem:[#allocation7 + $0x6c0] sm:$0xff]
    %v486 = vld [vmem:[#allocation7 + $0x6c8] sm:$0xff]
    %v487 = vld [vmem:[#allocation7 + $0x6d0] sm:$0xff]
    %v488 = vld [vmem:[#allocation7 + $0x6d8] sm:$0xff]
    %v489 = vld [vmem:[#allocation7 + $0x6e0] sm:$0xff]
    %v490 = vld [vmem:[#allocation7 + $0x6e8] sm:$0xff]
    %v491 = vld [vmem:[#allocation7 + $0x6f0] sm:$0xff]
    %v492 = vld [vmem:[#allocation7 + $0x6f8] sm:$0xff]
    %v493 = vld [vmem:[#allocation7 + $0x700] sm:$0xff]
    %v494 = vld [vmem:[#allocation7 + $0x708] sm:$0xff]
    %v495 = vld [vmem:[#allocation7 + $0x710] sm:$0xff]
    %v496 = vld [vmem:[#allocation7 + $0x718] sm:$0xff]
    %v497 = vld [vmem:[#allocation7 + $0x720] sm:$0xff]
    %v498 = vld [vmem:[#allocation7 + $0x728] sm:$0xff]
    %v499 = vld [vmem:[#allocation7 + $0x730] sm:$0xff]
    %v500 = vld [vmem:[#allocation7 + $0x738] sm:$0xff]
    %v501 = vld [vmem:[#allocation7 + $0x740] sm:$0xff]
    %v502 = vld [vmem:[#allocation7 + $0x748] sm:$0xff]
    %v503 = vld [vmem:[#allocation7 + $0x750] sm:$0xff]
    %v504 = vld [vmem:[#allocation7 + $0x758] sm:$0xff]
    %v505 = vld [vmem:[#allocation7 + $0x760] sm:$0xff]
    %v506 = vld [vmem:[#allocation7 + $0x768] sm:$0xff]
    %v507 = vld [vmem:[#allocation7 + $0x770] sm:$0xff]
    %v508 = vld [vmem:[#allocation7 + $0x778] sm:$0xff]
    %v509 = vld [vmem:[#allocation7 + $0x780] sm:$0xff]
    %v510 = vld [vmem:[#allocation7 + $0x788] sm:$0xff]
    %v511 = vld [vmem:[#allocation7 + $0x790] sm:$0xff]
    %v512 = vld [vmem:[#allocation7 + $0x798] sm:$0xff]
    %v513 = vld [vmem:[#allocation7 + $0x7a0] sm:$0xff]
    %v514 = vld [vmem:[#allocation7 + $0x7a8] sm:$0xff]
    %v515 = vld [vmem:[#allocation7 + $0x7b0] sm:$0xff]
    %v516 = vld [vmem:[#allocation7 + $0x7b8] sm:$0xff]
    %v517 = vld [vmem:[#allocation7 + $0x7c0] sm:$0xff]
    %v518 = vld [vmem:[#allocation7 + $0x7c8] sm:$0xff]
    %v519 = vld [vmem:[#allocation7 + $0x7d0] sm:$0xff]
    %v520 = vld [vmem:[#allocation7 + $0x7d8] sm:$0xff]
    %v521 = vld [vmem:[#allocation7 + $0x7e0] sm:$0xff]
    %v522 = vld [vmem:[#allocation7 + $0x7e8] sm:$0xff]
    %v523 = vld [vmem:[#allocation7 + $0x7f0] sm:$0xff]
    %v524 = vld [vmem:[#allocation7 + $0x7f8] sm:$0xff]
    %v525 = vld [vmem:[%s4] sm:$0xf]
    %v527 = vlaneseq
    %v528 = vshrl.u32 %v527, 7
    %v529 = vsub.s32 0, %v528
    %v530 = vrot.slane %v525, %v529
    %v531 = vlaneseq
    %v532 = vshrl.u32 %v531, 7
    %v533 = vsub.s32 1, %v532
    %v534 = vrot.slane %v525, %v533
    %v535 = vlaneseq
    %v536 = vshrl.u32 %v535, 7
    %v537 = vsub.s32 2, %v536
    %v538 = vrot.slane %v525, %v537
    %v539 = vlaneseq
    %v540 = vshrl.u32 %v539, 7
    %v541 = vsub.s32 3, %v540
    %v542 = vrot.slane %v525, %v541
    %547 = vmatprep.subr.mxu0 %v270
    %548 = vmatpush1.msra.mxu0 %v269
    %549 = vmatprep.subr.mxu0 %v274
    %550 = vmatpush1.msra.mxu0 %v273
    %551 = vmatprep.subr.mxu0 %v278
    %552 = vmatpush1.msra.mxu0 %v277
    %553 = vmatprep.subr.mxu0 %v282
    %554 = vmatpush1.msra.mxu0 %v281
    %555 = vmatprep.subr.mxu0 %v286
    %556 = vmatpush1.msra.mxu0 %v285
    %557 = vmatprep.subr.mxu0 %v290
    %558 = vmatpush1.msra.mxu0 %v289
    %559 = vmatprep.subr.mxu0 %v294
    %560 = vmatpush1.msra.mxu0 %v293
    %561 = vmatprep.subr.mxu0 %v298
    %562 = vmatpush1.msra.mxu0 %v297
    %563 = vmatprep.subr.mxu0 %v302
    %564 = vmatpush1.msra.mxu0 %v301
    %565 = vmatprep.subr.mxu0 %v306
    %566 = vmatpush1.msra.mxu0 %v305
    %567 = vmatprep.subr.mxu0 %v310
    %568 = vmatpush1.msra.mxu0 %v309
    %569 = vmatprep.subr.mxu0 %v314
    %570 = vmatpush1.msra.mxu0 %v313
    %571 = vmatprep.subr.mxu0 %v318
    %572 = vmatpush1.msra.mxu0 %v317
    %573 = vmatprep.subr.mxu0 %v322
    %574 = vmatpush1.msra.mxu0 %v321
    %575 = vmatprep.subr.mxu0 %v326
    %576 = vmatpush1.msra.mxu0 %v325
    %577 = vmatprep.subr.mxu0 %v330
    %578 = vmatpush1.msra.mxu0 %v329
    %579 = vmatprep.subr.mxu0 %v334
    %580 = vmatpush1.msra.mxu0 %v333
    %581 = vmatprep.subr.mxu0 %v338
    %582 = vmatpush1.msra.mxu0 %v337
    %583 = vmatprep.subr.mxu0 %v342
    %584 = vmatpush1.msra.mxu0 %v341
    %585 = vmatprep.subr.mxu0 %v346
    %586 = vmatpush1.msra.mxu0 %v345
    %587 = vmatprep.subr.mxu0 %v350
    %588 = vmatpush1.msra.mxu0 %v349
    %589 = vmatprep.subr.mxu0 %v354
    %590 = vmatpush1.msra.mxu0 %v353
    %591 = vmatprep.subr.mxu0 %v358
    %592 = vmatpush1.msra.mxu0 %v357
    %593 = vmatprep.subr.mxu0 %v362
    %594 = vmatpush1.msra.mxu0 %v361
    %595 = vmatprep.subr.mxu0 %v366
    %596 = vmatpush1.msra.mxu0 %v365
    %597 = vmatprep.subr.mxu0 %v370
    %598 = vmatpush1.msra.mxu0 %v369
    %599 = vmatprep.subr.mxu0 %v374
    %600 = vmatpush1.msra.mxu0 %v373
    %601 = vmatprep.subr.mxu0 %v378
    %602 = vmatpush1.msra.mxu0 %v377
    %603 = vmatprep.subr.mxu0 %v382
    %604 = vmatpush1.msra.mxu0 %v381
    %605 = vmatprep.subr.mxu0 %v386
    %606 = vmatpush1.msra.mxu0 %v385
    %607 = vmatprep.subr.mxu0 %v390
    %608 = vmatpush1.msra.mxu0 %v389
    %609 = vmatprep.subr.mxu0 %v394
    %610 = vmatpush1.msra.mxu0 %v393
    %611 = vmatprep.mubr.f32.mxu0 %v266
    %612 = vmatmul.mubr.f32.gmra.mrb[0].mxu0 %v265
    %v613 = vpop.f32.mrb[0].mxu0
    %v614 = vadd.f32 %v530, %v613
    %v615 = vpop.f32.mrb[0].mxu0
    %v616 = vadd.f32 %v534, %v615
    %617 = vdwg.mxu0
    %618 = vmatprep.subr.mxu0 %v398
    %619 = vmatpush1.msra.mxu0 %v397
    %620 = vmatprep.subr.mxu0 %v402
    %621 = vmatpush1.msra.mxu0 %v401
    %622 = vmatprep.subr.mxu0 %v406
    %623 = vmatpush1.msra.mxu0 %v405
    %624 = vmatprep.subr.mxu0 %v410
    %625 = vmatpush1.msra.mxu0 %v409
    %626 = vmatprep.subr.mxu0 %v414
    %627 = vmatpush1.msra.mxu0 %v413
    %628 = vmatprep.subr.mxu0 %v418
    %629 = vmatpush1.msra.mxu0 %v417
    %630 = vmatprep.subr.mxu0 %v422
    %631 = vmatpush1.msra.mxu0 %v421
    %632 = vmatprep.subr.mxu0 %v426
    %633 = vmatpush1.msra.mxu0 %v425
    %634 = vmatprep.subr.mxu0 %v430
    %635 = vmatpush1.msra.mxu0 %v429
    %636 = vmatprep.subr.mxu0 %v434
    %637 = vmatpush1.msra.mxu0 %v433
    %638 = vmatprep.subr.mxu0 %v438
    %639 = vmatpush1.msra.mxu0 %v437
    %640 = vmatprep.subr.mxu0 %v442
    %641 = vmatpush1.msra.mxu0 %v441
    %642 = vmatprep.subr.mxu0 %v446
    %643 = vmatpush1.msra.mxu0 %v445
    %644 = vmatprep.subr.mxu0 %v450
    %645 = vmatpush1.msra.mxu0 %v449
    %646 = vmatprep.subr.mxu0 %v454
    %647 = vmatpush1.msra.mxu0 %v453
    %648 = vmatprep.subr.mxu0 %v458
    %649 = vmatpush1.msra.mxu0 %v457
    %650 = vmatprep.subr.mxu0 %v462
    %651 = vmatpush1.msra.mxu0 %v461
    %652 = vmatprep.subr.mxu0 %v466
    %653 = vmatpush1.msra.mxu0 %v465
    %654 = vmatprep.subr.mxu0 %v470
    %655 = vmatpush1.msra.mxu0 %v469
    %656 = vmatprep.subr.mxu0 %v474
    %657 = vmatpush1.msra.mxu0 %v473
    %658 = vmatprep.subr.mxu0 %v478
    %659 = vmatpush1.msra.mxu0 %v477
    %660 = vmatprep.subr.mxu0 %v482
    %661 = vmatpush1.msra.mxu0 %v481
    %662 = vmatprep.subr.mxu0 %v486
    %663 = vmatpush1.msra.mxu0 %v485
    %664 = vmatprep.subr.mxu0 %v490
    %665 = vmatpush1.msra.mxu0 %v489
    %666 = vmatprep.subr.mxu0 %v494
    %667 = vmatpush1.msra.mxu0 %v493
    %668 = vmatprep.subr.mxu0 %v498
    %669 = vmatpush1.msra.mxu0 %v497
    %670 = vmatprep.subr.mxu0 %v502
    %671 = vmatpush1.msra.mxu0 %v501
    %672 = vmatprep.subr.mxu0 %v506
    %673 = vmatpush1.msra.mxu0 %v505
    %674 = vmatprep.subr.mxu0 %v510
    %675 = vmatpush1.msra.mxu0 %v509
    %676 = vmatprep.subr.mxu0 %v514
    %677 = vmatpush1.msra.mxu0 %v513
    %678 = vmatprep.subr.mxu0 %v518
    %679 = vmatpush1.msra.mxu0 %v517
    %680 = vmatprep.subr.mxu0 %v522
    %681 = vmatpush1.msra.mxu0 %v521
    %682 = vmatprep.mubr.f32.mxu0 %v268
    %683 = vmatmul.mubr.f32.gmra.mrb[0].mxu0 %v267
    %v684 = vpop.f32.mrb[0].mxu0
    %v685 = vadd.f32 %v614, %v684
    %v686 = vpop.f32.mrb[0].mxu0
    %v687 = vadd.f32 %v616, %v686
    %688 = vdwg.mxu0
    %689 = vmatprep.subr.mxu0 %v272
    %690 = vmatpush1.msra.mxu0 %v271
    %691 = vmatprep.subr.mxu0 %v276
    %692 = vmatpush1.msra.mxu0 %v275
    %693 = vmatprep.subr.mxu0 %v280
    %694 = vmatpush1.msra.mxu0 %v279
    %695 = vmatprep.subr.mxu0 %v284
    %696 = vmatpush1.msra.mxu0 %v283
    %697 = vmatprep.subr.mxu0 %v288
    %698 = vmatpush1.msra.mxu0 %v287
    %699 = vmatprep.subr.mxu0 %v292
    %700 = vmatpush1.msra.mxu0 %v291
    %701 = vmatprep.subr.mxu0 %v296
    %702 = vmatpush1.msra.mxu0 %v295
    %703 = vmatprep.subr.mxu0 %v300
    %704 = vmatpush1.msra.mxu0 %v299
    %705 = vmatprep.subr.mxu0 %v304
    %706 = vmatpush1.msra.mxu0 %v303
    %707 = vmatprep.subr.mxu0 %v308
    %708 = vmatpush1.msra.mxu0 %v307
    %709 = vmatprep.subr.mxu0 %v312
    %710 = vmatpush1.msra.mxu0 %v311
    %711 = vmatprep.subr.mxu0 %v316
    %712 = vmatpush1.msra.mxu0 %v315
    %713 = vmatprep.subr.mxu0 %v320
    %714 = vmatpush1.msra.mxu0 %v319
    %715 = vmatprep.subr.mxu0 %v324
    %716 = vmatpush1.msra.mxu0 %v323
    %717 = vmatprep.subr.mxu0 %v328
    %718 = vmatpush1.msra.mxu0 %v327
    %719 = vmatprep.subr.mxu0 %v332
    %720 = vmatpush1.msra.mxu0 %v331
    %721 = vmatprep.subr.mxu0 %v336
    %722 = vmatpush1.msra.mxu0 %v335
    %723 = vmatprep.subr.mxu0 %v340
    %724 = vmatpush1.msra.mxu0 %v339
    %725 = vmatprep.subr.mxu0 %v344
    %726 = vmatpush1.msra.mxu0 %v343
    %727 = vmatprep.subr.mxu0 %v348
    %728 = vmatpush1.msra.mxu0 %v347
    %729 = vmatprep.subr.mxu0 %v352
    %730 = vmatpush1.msra.mxu0 %v351
    %731 = vmatprep.subr.mxu0 %v356
    %732 = vmatpush1.msra.mxu0 %v355
    %733 = vmatprep.subr.mxu0 %v360
    %734 = vmatpush1.msra.mxu0 %v359
    %735 = vmatprep.subr.mxu0 %v364
    %736 = vmatpush1.msra.mxu0 %v363
    %737 = vmatprep.subr.mxu0 %v368
    %738 = vmatpush1.msra.mxu0 %v367
    %739 = vmatprep.subr.mxu0 %v372
    %740 = vmatpush1.msra.mxu0 %v371
    %741 = vmatprep.subr.mxu0 %v376
    %742 = vmatpush1.msra.mxu0 %v375
    %743 = vmatprep.subr.mxu0 %v380
    %744 = vmatpush1.msra.mxu0 %v379
    %745 = vmatprep.subr.mxu0 %v384
    %746 = vmatpush1.msra.mxu0 %v383
    %747 = vmatprep.subr.mxu0 %v388
    %748 = vmatpush1.msra.mxu0 %v387
    %749 = vmatprep.subr.mxu0 %v392
    %750 = vmatpush1.msra.mxu0 %v391
    %751 = vmatprep.subr.mxu0 %v396
    %752 = vmatpush1.msra.mxu0 %v395
    %753 = vmatprep.mubr.f32.mxu0 %v266
    %754 = vmatmul.mubr.f32.gmra.mrb[0].mxu0 %v265
    %v755 = vpop.f32.mrb[0].mxu0
    %v756 = vadd.f32 %v538, %v755
    %v757 = vpop.f32.mrb[0].mxu0
    %v758 = vadd.f32 %v542, %v757
    %759 = vdwg.mxu0
    %760 = vmatprep.subr.mxu0 %v400
    %761 = vmatpush1.msra.mxu0 %v399
    %762 = vmatprep.subr.mxu0 %v404
    %763 = vmatpush1.msra.mxu0 %v403
    %764 = vmatprep.subr.mxu0 %v408
    %765 = vmatpush1.msra.mxu0 %v407
    %766 = vmatprep.subr.mxu0 %v412
    %767 = vmatpush1.msra.mxu0 %v411
    %768 = vmatprep.subr.mxu0 %v416
    %769 = vmatpush1.msra.mxu0 %v415
    %770 = vmatprep.subr.mxu0 %v420
    %771 = vmatpush1.msra.mxu0 %v419
    %772 = vmatprep.subr.mxu0 %v424
    %773 = vmatpush1.msra.mxu0 %v423
    %774 = vmatprep.subr.mxu0 %v428
    %775 = vmatpush1.msra.mxu0 %v427
    %776 = vmatprep.subr.mxu0 %v432
    %777 = vmatpush1.msra.mxu0 %v431
    %778 = vmatprep.subr.mxu0 %v436
    %779 = vmatpush1.msra.mxu0 %v435
    %780 = vmatprep.subr.mxu0 %v440
    %781 = vmatpush1.msra.mxu0 %v439
    %782 = vmatprep.subr.mxu0 %v444
    %783 = vmatpush1.msra.mxu0 %v443
    %784 = vmatprep.subr.mxu0 %v448
    %785 = vmatpush1.msra.mxu0 %v447
    %786 = vmatprep.subr.mxu0 %v452
    %787 = vmatpush1.msra.mxu0 %v451
    %788 = vmatprep.subr.mxu0 %v456
    %789 = vmatpush1.msra.mxu0 %v455
    %790 = vmatprep.subr.mxu0 %v460
    %791 = vmatpush1.msra.mxu0 %v459
    %792 = vmatprep.subr.mxu0 %v464
    %793 = vmatpush1.msra.mxu0 %v463
    %794 = vmatprep.subr.mxu0 %v468
    %795 = vmatpush1.msra.mxu0 %v467
    %796 = vmatprep.subr.mxu0 %v472
    %797 = vmatpush1.msra.mxu0 %v471
    %798 = vmatprep.subr.mxu0 %v476
    %799 = vmatpush1.msra.mxu0 %v475
    %800 = vmatprep.subr.mxu0 %v480
    %801 = vmatpush1.msra.mxu0 %v479
    %802 = vmatprep.subr.mxu0 %v484
    %803 = vmatpush1.msra.mxu0 %v483
    %804 = vmatprep.subr.mxu0 %v488
    %805 = vmatpush1.msra.mxu0 %v487
    %806 = vmatprep.subr.mxu0 %v492
    %807 = vmatpush1.msra.mxu0 %v491
    %808 = vmatprep.subr.mxu0 %v496
    %809 = vmatpush1.msra.mxu0 %v495
    %810 = vmatprep.subr.mxu0 %v500
    %811 = vmatpush1.msra.mxu0 %v499
    %812 = vmatprep.subr.mxu0 %v504
    %813 = vmatpush1.msra.mxu0 %v503
    %814 = vmatprep.subr.mxu0 %v508
    %815 = vmatpush1.msra.mxu0 %v507
    %816 = vmatprep.subr.mxu0 %v512
    %817 = vmatpush1.msra.mxu0 %v511
    %818 = vmatprep.subr.mxu0 %v516
    %819 = vmatpush1.msra.mxu0 %v515
    %820 = vmatprep.subr.mxu0 %v520
    %821 = vmatpush1.msra.mxu0 %v519
    %822 = vmatprep.subr.mxu0 %v524
    %823 = vmatpush1.msra.mxu0 %v523
    %824 = vmatprep.mubr.f32.mxu0 %v268
    %825 = vmatmul.mubr.f32.gmra.mrb[0].mxu0 %v267
    %v826 = vpop.f32.mrb[0].mxu0
    %v827 = vadd.f32 %v756, %v826
    %v828 = vpop.f32.mrb[0].mxu0
    %v829 = vadd.f32 %v758, %v828
    %830 = vdwg.mxu0
    %v831 = vmax.f32 %v685, 0.0
    %v832 = vmax.f32 %v687, 0.0
    %v833 = vmax.f32 %v827, 0.0
    %v834 = vmax.f32 %v829, 0.0
    %v835 = vld [vmem:[#allocation8] sm:$0xff]
    %v836 = vld [vmem:[#allocation8 + $0x8] sm:$0xff]
    %v837 = vld [vmem:[#allocation8 + $0x10] sm:$0xff]
    %v838 = vld [vmem:[#allocation8 + $0x18] sm:$0xff]
    %v839 = vld [vmem:[#allocation8 + $0x20] sm:$0xff]
    %v840 = vld [vmem:[#allocation8 + $0x28] sm:$0xff]
    %v841 = vld [vmem:[#allocation8 + $0x30] sm:$0xff]
    %v842 = vld [vmem:[#allocation8 + $0x38] sm:$0xff]
    %v843 = vld [vmem:[#allocation8 + $0x40] sm:$0xff]
    %v844 = vld [vmem:[#allocation8 + $0x48] sm:$0xff]
    %v845 = vld [vmem:[#allocation8 + $0x50] sm:$0xff]
    %v846 = vld [vmem:[#allocation8 + $0x58] sm:$0xff]
    %v847 = vld [vmem:[#allocation8 + $0x60] sm:$0xff]
    %v848 = vld [vmem:[#allocation8 + $0x68] sm:$0xff]
    %v849 = vld [vmem:[#allocation8 + $0x70] sm:$0xff]
    %v850 = vld [vmem:[#allocation8 + $0x78] sm:$0xff]
    %v851 = vld [vmem:[#allocation8 + $0x80] sm:$0xff]
    %v852 = vld [vmem:[#allocation8 + $0x88] sm:$0xff]
    %v853 = vld [vmem:[#allocation8 + $0x90] sm:$0xff]
    %v854 = vld [vmem:[#allocation8 + $0x98] sm:$0xff]
    %v855 = vld [vmem:[#allocation8 + $0xa0] sm:$0xff]
    %v856 = vld [vmem:[#allocation8 + $0xa8] sm:$0xff]
    %v857 = vld [vmem:[#allocation8 + $0xb0] sm:$0xff]
    %v858 = vld [vmem:[#allocation8 + $0xb8] sm:$0xff]
    %v859 = vld [vmem:[#allocation8 + $0xc0] sm:$0xff]
    %v860 = vld [vmem:[#allocation8 + $0xc8] sm:$0xff]
    %v861 = vld [vmem:[#allocation8 + $0xd0] sm:$0xff]
    %v862 = vld [vmem:[#allocation8 + $0xd8] sm:$0xff]
    %v863 = vld [vmem:[#allocation8 + $0xe0] sm:$0xff]
    %v864 = vld [vmem:[#allocation8 + $0xe8] sm:$0xff]
    %v865 = vld [vmem:[#allocation8 + $0xf0] sm:$0xff]
    %v866 = vld [vmem:[#allocation8 + $0xf8] sm:$0xff]
    %v867 = vld [vmem:[#allocation8 + $0x100] sm:$0xff]
    %v868 = vld [vmem:[#allocation8 + $0x108] sm:$0xff]
    %v869 = vld [vmem:[#allocation8 + $0x110] sm:$0xff]
    %v870 = vld [vmem:[#allocation8 + $0x118] sm:$0xff]
    %v871 = vld [vmem:[#allocation8 + $0x120] sm:$0xff]
    %v872 = vld [vmem:[#allocation8 + $0x128] sm:$0xff]
    %v873 = vld [vmem:[#allocation8 + $0x130] sm:$0xff]
    %v874 = vld [vmem:[#allocation8 + $0x138] sm:$0xff]
    %v875 = vld [vmem:[#allocation8 + $0x140] sm:$0xff]
    %v876 = vld [vmem:[#allocation8 + $0x148] sm:$0xff]
    %v877 = vld [vmem:[#allocation8 + $0x150] sm:$0xff]
    %v878 = vld [vmem:[#allocation8 + $0x158] sm:$0xff]
    %v879 = vld [vmem:[#allocation8 + $0x160] sm:$0xff]
    %v880 = vld [vmem:[#allocation8 + $0x168] sm:$0xff]
    %v881 = vld [vmem:[#allocation8 + $0x170] sm:$0xff]
    %v882 = vld [vmem:[#allocation8 + $0x178] sm:$0xff]
    %v883 = vld [vmem:[#allocation8 + $0x180] sm:$0xff]
    %v884 = vld [vmem:[#allocation8 + $0x188] sm:$0xff]
    %v885 = vld [vmem:[#allocation8 + $0x190] sm:$0xff]
    %v886 = vld [vmem:[#allocation8 + $0x198] sm:$0xff]
    %v887 = vld [vmem:[#allocation8 + $0x1a0] sm:$0xff]
    %v888 = vld [vmem:[#allocation8 + $0x1a8] sm:$0xff]
    %v889 = vld [vmem:[#allocation8 + $0x1b0] sm:$0xff]
    %v890 = vld [vmem:[#allocation8 + $0x1b8] sm:$0xff]
    %v891 = vld [vmem:[#allocation8 + $0x1c0] sm:$0xff]
    %v892 = vld [vmem:[#allocation8 + $0x1c8] sm:$0xff]
    %v893 = vld [vmem:[#allocation8 + $0x1d0] sm:$0xff]
    %v894 = vld [vmem:[#allocation8 + $0x1d8] sm:$0xff]
    %v895 = vld [vmem:[#allocation8 + $0x1e0] sm:$0xff]
    %v896 = vld [vmem:[#allocation8 + $0x1e8] sm:$0xff]
    %v897 = vld [vmem:[#allocation8 + $0x1f0] sm:$0xff]
    %v898 = vld [vmem:[#allocation8 + $0x1f8] sm:$0xff]
    %v899 = vld [vmem:[%s6] sm:$0x1]
    %v901 = vlaneseq
    %v902 = vshrl.u32 %v901, 7
    %v903 = vsub.s32 0, %v902
    %v904 = vrot.slane %v899, %v903
    %906 = vmatprep.subr.mxu0 0.0
    %907 = vmatpush1.msra.mxu0 %v835
    %908 = vmatprep.subr.mxu0 0.0
    %909 = vmatpush1.msra.mxu0 %v836
    %910 = vmatprep.subr.mxu0 0.0
    %911 = vmatpush1.msra.mxu0 %v837
    %912 = vmatprep.subr.mxu0 0.0
    %913 = vmatpush1.msra.mxu0 %v838
    %914 = vmatprep.subr.mxu0 0.0
    %915 = vmatpush1.msra.mxu0 %v839
    %916 = vmatprep.subr.mxu0 0.0
    %917 = vmatpush1.msra.mxu0 %v840
    %918 = vmatprep.subr.mxu0 0.0
    %919 = vmatpush1.msra.mxu0 %v841
    %920 = vmatprep.subr.mxu0 0.0
    %921 = vmatpush1.msra.mxu0 %v842
    %922 = vmatprep.subr.mxu0 0.0
    %923 = vmatpush1.msra.mxu0 %v843
    %924 = vmatprep.subr.mxu0 0.0
    %925 = vmatpush1.msra.mxu0 %v844
    %926 = vmatprep.subr.mxu0 0.0
    %927 = vmatpush1.msra.mxu0 %v845
    %928 = vmatprep.subr.mxu0 0.0
    %929 = vmatpush1.msra.mxu0 %v846
    %930 = vmatprep.subr.mxu0 0.0
    %931 = vmatpush1.msra.mxu0 %v847
    %932 = vmatprep.subr.mxu0 0.0
    %933 = vmatpush1.msra.mxu0 %v848
    %934 = vmatprep.subr.mxu0 0.0
    %935 = vmatpush1.msra.mxu0 %v849
    %936 = vmatprep.subr.mxu0 0.0
    %937 = vmatpush1.msra.mxu0 %v850
    %938 = vmatprep.subr.mxu0 0.0
    %939 = vmatpush1.msra.mxu0 %v851
    %940 = vmatprep.subr.mxu0 0.0
    %941 = vmatpush1.msra.mxu0 %v852
    %942 = vmatprep.subr.mxu0 0.0
    %943 = vmatpush1.msra.mxu0 %v853
    %944 = vmatprep.subr.mxu0 0.0
    %945 = vmatpush1.msra.mxu0 %v854
    %946 = vmatprep.subr.mxu0 0.0
    %947 = vmatpush1.msra.mxu0 %v855
    %948 = vmatprep.subr.mxu0 0.0
    %949 = vmatpush1.msra.mxu0 %v856
    %950 = vmatprep.subr.mxu0 0.0
    %951 = vmatpush1.msra.mxu0 %v857
    %952 = vmatprep.subr.mxu0 0.0
    %953 = vmatpush1.msra.mxu0 %v858
    %954 = vmatprep.subr.mxu0 0.0
    %955 = vmatpush1.msra.mxu0 %v859
    %956 = vmatprep.subr.mxu0 0.0
    %957 = vmatpush1.msra.mxu0 %v860
    %958 = vmatprep.subr.mxu0 0.0
    %959 = vmatpush1.msra.mxu0 %v861
    %960 = vmatprep.subr.mxu0 0.0
    %961 = vmatpush1.msra.mxu0 %v862
    %962 = vmatprep.subr.mxu0 0.0
    %963 = vmatpush1.msra.mxu0 %v863
    %964 = vmatprep.subr.mxu0 0.0
    %965 = vmatpush1.msra.mxu0 %v864
    %966 = vmatprep.subr.mxu0 0.0
    %967 = vmatpush1.msra.mxu0 %v865
    %968 = vmatprep.subr.mxu0 0.0
    %969 = vmatpush1.msra.mxu0 %v866
    %970 = vmatprep.mubr.f32.mxu0 %v832
    %971 = vmatmul.mubr.f32.gmra.mrb[0].mxu0 %v831
    %v972 = vpop.f32.mrb[0].mxu0
    %v973 = vadd.f32 %v904, %v972
    %v974 = vpop.f32.mrb[0].mxu0
    %975 = vdwg.mxu0
    %976 = vmatprep.subr.mxu0 0.0
    %977 = vmatpush1.msra.mxu0 %v867
    %978 = vmatprep.subr.mxu0 0.0
    %979 = vmatpush1.msra.mxu0 %v868
    %980 = vmatprep.subr.mxu0 0.0
    %981 = vmatpush1.msra.mxu0 %v869
    %982 = vmatprep.subr.mxu0 0.0
    %983 = vmatpush1.msra.mxu0 %v870
    %984 = vmatprep.subr.mxu0 0.0
    %985 = vmatpush1.msra.mxu0 %v871
    %986 = vmatprep.subr.mxu0 0.0
    %987 = vmatpush1.msra.mxu0 %v872
    %988 = vmatprep.subr.mxu0 0.0
    %989 = vmatpush1.msra.mxu0 %v873
    %990 = vmatprep.subr.mxu0 0.0
    %991 = vmatpush1.msra.mxu0 %v874
    %992 = vmatprep.subr.mxu0 0.0
    %993 = vmatpush1.msra.mxu0 %v875
    %994 = vmatprep.subr.mxu0 0.0
    %995 = vmatpush1.msra.mxu0 %v876
    %996 = vmatprep.subr.mxu0 0.0
    %997 = vmatpush1.msra.mxu0 %v877
    %998 = vmatprep.subr.mxu0 0.0
    %999 = vmatpush1.msra.mxu0 %v878
    %1000 = vmatprep.subr.mxu0 0.0
    %1001 = vmatpush1.msra.mxu0 %v879
    %1002 = vmatprep.subr.mxu0 0.0
    %1003 = vmatpush1.msra.mxu0 %v880
    %1004 = vmatprep.subr.mxu0 0.0
    %1005 = vmatpush1.msra.mxu0 %v881
    %1006 = vmatprep.subr.mxu0 0.0
    %1007 = vmatpush1.msra.mxu0 %v882
    %1008 = vmatprep.subr.mxu0 0.0
    %1009 = vmatpush1.msra.mxu0 %v883
    %1010 = vmatprep.subr.mxu0 0.0
    %1011 = vmatpush1.msra.mxu0 %v884
    %1012 = vmatprep.subr.mxu0 0.0
    %1013 = vmatpush1.msra.mxu0 %v885
    %1014 = vmatprep.subr.mxu0 0.0
    %1015 = vmatpush1.msra.mxu0 %v886
    %1016 = vmatprep.subr.mxu0 0.0
    %1017 = vmatpush1.msra.mxu0 %v887
    %1018 = vmatprep.subr.mxu0 0.0
    %1019 = vmatpush1.msra.mxu0 %v888
    %1020 = vmatprep.subr.mxu0 0.0
    %1021 = vmatpush1.msra.mxu0 %v889
    %1022 = vmatprep.subr.mxu0 0.0
    %1023 = vmatpush1.msra.mxu0 %v890
    %1024 = vmatprep.subr.mxu0 0.0
    %1025 = vmatpush1.msra.mxu0 %v891
    %1026 = vmatprep.subr.mxu0 0.0
    %1027 = vmatpush1.msra.mxu0 %v892
    %1028 = vmatprep.subr.mxu0 0.0
    %1029 = vmatpush1.msra.mxu0 %v893
    %1030 = vmatprep.subr.mxu0 0.0
    %1031 = vmatpush1.msra.mxu0 %v894
    %1032 = vmatprep.subr.mxu0 0.0
    %1033 = vmatpush1.msra.mxu0 %v895
    %1034 = vmatprep.subr.mxu0 0.0
    %1035 = vmatpush1.msra.mxu0 %v896
    %1036 = vmatprep.subr.mxu0 0.0
    %1037 = vmatpush1.msra.mxu0 %v897
    %1038 = vmatprep.subr.mxu0 0.0
    %1039 = vmatpush1.msra.mxu0 %v898
    %1040 = vmatprep.mubr.f32.mxu0 %v834
    %1041 = vmatmul.mubr.f32.gmra.mrb[0].mxu0 %v833
    %v1042 = vpop.f32.mrb[0].mxu0
    %v1043 = vadd.f32 %v973, %v1042
    %v1044 = vpop.f32.mrb[0].mxu0
    %1045 = vdwg.mxu0
    %v1046 = vmax.f32 %v1043, 0.0
    %1047 = vst [vmem:[#allocation10] sm:$0xff] %v1046
    // Predicated region
    $region46: #{tpu_custom_call.1} parent=1 // pred_check
      _
    $region47: #{tpu_custom_call.1} parent=1 // pred_check_branch
      %1049 = sbr.rel (0) target = $region49
    $region48: #{tpu_custom_call.1} parent=1 // pred_region
      %s1051 = ssub.s32 128, 128
      %1052 = vsyncadd [#allocation4], %s1051
      %s1054 = sshll.u32 [#allocation10], 4
      %s1055 = int_to_ptr.vmem [resolvable:$true] %s1054
      %1057 = dma.vmem_to_hbm [thread:$0]  %s1055, 128, %s7, [#allocation4]
    $region49: #{tpu_custom_call.1} parent=1 // pred_fallthru
      _
    // Predicated region
    $region50: #{tpu_custom_call.1} parent=1 // pred_check
      _
    $region51: #{tpu_custom_call.1} parent=1 // pred_check_branch
      %1059 = sbr.rel (0) target = $region53
    $region52: #{tpu_custom_call.1} parent=1 // pred_region
      %1060 = dma.done [#allocation4], 128
    $region53: #{tpu_custom_call.1} parent=1 // pred_fallthru
      _
    %1061 = vsyncpa [#allocation3], 1
    %1062 = vsyncpa [#allocation6], 1
    %1063 = vsyncpa [#allocation9], 1
    %1064 = vsyncpa [#allocation4], 1

</llo_original>
